<compile_context>
chip_gen: v7x
topology: tpu7x:2x2x1
jax: 0.10.0
libtpu: 0.0.40
codegen_flags: <defaults>
</compile_context>

<pallas_src>
import functools

import jax
import jax.numpy as jnp
from jax import lax
from jax.experimental import pallas as pl
from jax.experimental.pallas import tpu as pltpu

EPS = 1e-5  # nn.LayerNorm default


def _round_up(n, m):
    return ((n + m - 1) // m) * m


def _layernorm_f32(x, gamma, beta, d_real, d_pad):
    """LayerNorm over the last axis; x is f32 [rows, d_pad] with padded lanes zero."""
    inv_d = jnp.float32(1.0 / d_real)
    if d_real == d_pad:
        # No padding: centered (numerically stable) form, no mask needed.
        mean = jnp.sum(x, axis=-1, keepdims=True) * inv_d
        xc = x - mean
        var = jnp.sum(xc * xc, axis=-1, keepdims=True) * inv_d
    else:
        # Padded lanes are zero, so a single pass of (sum, sum-of-squares)
        # yields the real-lane moments with no iota/where mask.
        s = jnp.sum(x, axis=-1, keepdims=True)
        sq = jnp.sum(x * x, axis=-1, keepdims=True)
        mean = s * inv_d
        var = jnp.maximum(sq * inv_d - mean * mean, 0.0)
        xc = x - mean
    inv = lax.rsqrt(var + EPS)
    # gamma/beta are zero-padded, so padded lanes come out exactly zero.
    return xc * inv * gamma + beta


def _prenorm_resident_kernel(x_ref, gamma_ref, beta_ref, wt_ref, b_ref, o_ref,
                             *, d_real, d_pad):
    # x_ref: [tt, D_pad]; wt_ref: [D_pad, D_pad] (W^T, resident); b_ref: [1, D_pad]
    x = x_ref[...].astype(jnp.float32)
    y = _layernorm_f32(x, gamma_ref[...], beta_ref[...], d_real, d_pad)
    y_mx = y.astype(wt_ref.dtype)
    out = jnp.dot(y_mx, wt_ref[...], preferred_element_type=jnp.float32)
    o_ref[...] = (out + b_ref[...]).astype(o_ref.dtype)


def _prenorm_tiled_kernel(x_ref, gamma_ref, beta_ref, wt_ref, b_ref, o_ref,
                          y_scratch, *, d_real, d_pad):
    # x_ref: [tt, D_pad]; wt_ref: [D_pad, tn] column block; b_ref: [1, tn]
    # y_scratch: [tt, D_pad] (MXU dtype) -- LayerNorm cache, valid across j.
    @pl.when(pl.program_id(1) == 0)
    def _():
        x = x_ref[...].astype(jnp.float32)
        y = _layernorm_f32(x, gamma_ref[...], beta_ref[...], d_real, d_pad)
        y_scratch[...] = y.astype(y_scratch.dtype)

    out = jnp.dot(y_scratch[...], wt_ref[...], preferred_element_type=jnp.float32)
    o_ref[...] = (out + b_ref[...]).astype(o_ref.dtype)


def prenorm(x, gamma, beta, w, b, *, tokens_per_tile=512, n_tile=None,
            mxu_dtype=None):
    """x: [B, S, D]. Returns fn(LayerNorm(x)) with fn = Linear(D, D) (torch conv.)."""
    B, S, D = x.shape
    T = B * S
    out_dtype = x.dtype
    mxu_dt = jnp.dtype(mxu_dtype) if mxu_dtype is not None else jnp.dtype(w.dtype)

    # --- tiling / padding choices ---
    D_pad = _round_up(D, 128)                       # lane-dense feature dim
    sub = 16 if x.dtype == jnp.bfloat16 else 8      # sublane packing
    tt = max(sub, min(tokens_per_tile, _round_up(T, sub)))
    tt = _round_up(tt, sub)

    x_item = jnp.dtype(x.dtype).itemsize
    o_item = jnp.dtype(out_dtype).itemsize
    w_item = mxu_dt.itemsize

    # Generation-aware VMEM ceiling (~3/4 of physical: ~48 MiB on v7x's 64 MiB,
    # ~96 MiB on v5e/v6e's 128 MiB).
    try:
        vmem_cap = int(pltpu.get_tpu_info().vmem_capacity_bytes)
    except Exception:  # pragma: no cover - conservative fallback
        vmem_cap = 64 << 20
    vmem_ceiling = (vmem_cap * 3) // 4

    def resident_bytes(tt_):
        return (2 * tt_ * D_pad * x_item          # x tile, double buffered
                + 2 * tt_ * D_pad * o_item        # out tile, double buffered
                + D_pad * D_pad * w_item          # W^T, single buffered (invariant)
                + 4 * D_pad * 4                   # gamma/beta/bias (single buffered)
                + (2 << 20))                      # headroom

    def tiled_bytes(tt_, tn_):
        return (2 * tt_ * D_pad * x_item
                + 2 * tt_ * tn_ * o_item
                + 2 * D_pad * tn_ * w_item        # W^T column block, double buffered
                + tt_ * D_pad * w_item            # y cache scratch
                + 2 * D_pad * 4 + 4 * tn_ * 4
                + (2 << 20))

    if n_tile is not None:
        tn = n_tile
    elif resident_bytes(tt) <= vmem_ceiling:
        tn = D_pad                                # W^T fully resident -> 1-D grid
    else:
        tn = next(c for c in (512, 256, 128) if D_pad % c == 0)
        while tiled_bytes(tt, tn) > vmem_ceiling and tt > 2 * sub:
            tt = _round_up(tt // 2, sub)
        # TODO(synk): add a K-tiled (accumulator-scratch, 'arbitrary' K axis)
        # fallback for very large D where (tt, D_pad) + (D_pad, tn) still
        # overflows VMEM instead of only shrinking the token tile.
    assert D_pad % tn == 0

    T_pad = _round_up(T, tt)

    # --- wrapper-side layout plumbing (skipped when already aligned) ---
    x2 = x.reshape(T, D)
    if T_pad != T or D_pad != D:
        x2 = jnp.pad(x2, ((0, T_pad - T), (0, D_pad - D)))

    pad_d = D_pad - D

    def _row(v):
        v = v.astype(jnp.float32)
        if pad_d:
            v = jnp.pad(v, (0, pad_d))
        return v.reshape(1, D_pad)

    gamma2 = _row(gamma)
    beta2 = _row(beta)
    b2 = _row(b)
    # torch Linear weight is [out, in]; pre-transpose so the kernel contracts
    # on dim 0 with no in-kernel transpose. Zero-padded rows/cols are inert.
    w_p = jnp.pad(w, ((0, pad_d), (0, pad_d))) if pad_d else w
    wt = w_p.T.astype(mxu_dt)                       # [D_pad(in), D_pad(out)]

    n_i = T_pad // tt
    n_j = D_pad // tn
    resident = (n_j == 1)

    # Advisory cost hint; accounts for W re-reads on the column-tiled path.
    w_passes = 1 if resident else n_i
    cost = pl.CostEstimate(
        flops=2 * T_pad * D_pad * D_pad,
        transcendentals=T_pad,                      # one rsqrt per token
        bytes_accessed=int(T_pad * D_pad * x_item
                           + T_pad * D_pad * o_item
                           + w_passes * D_pad * D_pad * w_item
                           + 3 * D_pad * 4),
    )

    need = resident_bytes(tt) if resident else tiled_bytes(tt, tn)
    vmem_bytes = int(min(max(need + (2 << 20), 16 << 20), vmem_ceiling))

    single = pl.Buffered(buffer_count=1)            # grid-invariant operands

    if resident:
        kernel = functools.partial(_prenorm_resident_kernel, d_real=D, d_pad=D_pad)
        grid_spec = pltpu.PrefetchScalarGridSpec(
            num_scalar_prefetch=0,
            grid=(n_i,),
            in_specs=[
                pl.BlockSpec((tt, D_pad), lambda i: (i, 0)),                           # x
                pl.BlockSpec((1, D_pad), lambda i: (0, 0), pipeline_mode=single),      # gamma
                pl.BlockSpec((1, D_pad), lambda i: (0, 0), pipeline_mode=single),      # beta
                pl.BlockSpec((D_pad, D_pad), lambda i: (0, 0), pipeline_mode=single),  # W^T
                pl.BlockSpec((1, D_pad), lambda i: (0, 0), pipeline_mode=single),      # bias
            ],
            out_specs=pl.BlockSpec((tt, D_pad), lambda i: (i, 0)),
        )
        dims = ("parallel",)
    else:
        kernel = functools.partial(_prenorm_tiled_kernel, d_real=D, d_pad=D_pad)
        grid_spec = pltpu.PrefetchScalarGridSpec(
            num_scalar_prefetch=0,
            grid=(n_i, n_j),
            in_specs=[
                pl.BlockSpec((tt, D_pad), lambda i, j: (i, 0)),                        # x
                pl.BlockSpec((1, D_pad), lambda i, j: (0, 0), pipeline_mode=single),   # gamma
                pl.BlockSpec((1, D_pad), lambda i, j: (0, 0), pipeline_mode=single),   # beta
                pl.BlockSpec((D_pad, tn), lambda i, j: (0, j)),                        # W^T cols
                pl.BlockSpec((1, tn), lambda i, j: (0, j)),                            # bias
            ],
            out_specs=pl.BlockSpec((tt, tn), lambda i, j: (i, j)),
            scratch_shapes=[pltpu.VMEM((tt, D_pad), mxu_dt)],                          # y cache
        )
        # j carries the cached y tile in scratch -> must be 'arbitrary';
        # token axis i is the one sharded across TensorCores.
        dims = ("parallel", "arbitrary")

    out = pl.pallas_call(
        kernel,
        out_shape=jax.ShapeDtypeStruct((T_pad, D_pad), out_dtype),
        grid_spec=grid_spec,
        compiler_params=pltpu.CompilerParams(
            dimension_semantics=dims,
            vmem_limit_bytes=vmem_bytes,
        ),
        cost_estimate=cost,
    )(x2, gamma2, beta2, wt, b2)

    if T_pad != T or D_pad != D:
        out = out[:T, :D]
    return out.reshape(B, S, D)


def prenorm_ref(x, gamma, beta, w, b):
    xf = x.astype(jnp.float32)
    mean = jnp.mean(xf, axis=-1, keepdims=True)
    var = jnp.mean((xf - mean) ** 2, axis=-1, keepdims=True)
    y = (xf - mean) * lax.rsqrt(var + EPS) * gamma.astype(jnp.float32) + beta.astype(jnp.float32)
    out = y @ w.astype(jnp.float32).T + b.astype(jnp.float32)
    return out.astype(x.dtype)


if __name__ == "__main__":
    key = jax.random.PRNGKey(0)
    kx, kw, kb, kx2, kw2, kb2, kx3, kw3, kb3, kg3 = jax.random.split(key, 10)

    # --- case 1: nominal small shape (resident-W fast path) ---
    B, S, D = 2, 8, 32
    x = jax.random.normal(kx, (B, S, D), dtype=jnp.float32)
    gamma = jnp.ones((D,), dtype=jnp.float32)       # LayerNorm weight init
    beta = jnp.zeros((D,), dtype=jnp.float32)       # LayerNorm bias init
    w = jax.random.normal(kw, (D, D), dtype=jnp.float32) * 0.05   # fn = Linear(D, D)
    b = jax.random.normal(kb, (D,), dtype=jnp.float32) * 0.01

    out = jax.block_until_ready(prenorm(x, gamma, beta, w, b))
    ref = prenorm_ref(x, gamma, beta, w, b)
    assert out.shape == (B, S, D)
    assert jnp.allclose(out, ref, atol=1e-4, rtol=1e-4)

    # --- case 2: ragged token count + non-128 D (exercises padding + one-pass moments) ---
    B2, S2, D2 = 2, 7, 48
    x2 = jax.random.normal(kx2, (B2, S2, D2), dtype=jnp.float32)
    gamma2 = jnp.ones((D2,), dtype=jnp.float32)
    beta2 = jnp.zeros((D2,), dtype=jnp.float32)
    w2 = jax.random.normal(kw2, (D2, D2), dtype=jnp.float32) * 0.05
    b2 = jax.random.normal(kb2, (D2,), dtype=jnp.float32) * 0.01

    out2 = jax.block_until_ready(prenorm(x2, gamma2, beta2, w2, b2, tokens_per_tile=8))
    ref2 = prenorm_ref(x2, gamma2, beta2, w2, b2)
    assert out2.shape == (B2, S2, D2)
    assert jnp.allclose(out2, ref2, atol=1e-4, rtol=1e-4)

    # --- case 3: forced column-tiled W path (y-cache scratch, 2-D grid, pl.when) ---
    B3, S3, D3 = 1, 16, 256
    x3 = jax.random.normal(kx3, (B3, S3, D3), dtype=jnp.float32)
    gamma3 = 1.0 + 0.1 * jax.random.normal(kg3, (D3,), dtype=jnp.float32)
    beta3 = 0.1 * jnp.ones((D3,), dtype=jnp.float32)
    w3 = jax.random.normal(kw3, (D3, D3), dtype=jnp.float32) * 0.02
    b3 = jax.random.normal(kb3, (D3,), dtype=jnp.float32) * 0.01

    out3 = jax.block_until_ready(
        prenorm(x3, gamma3, beta3, w3, b3, tokens_per_tile=8, n_tile=128))
    ref3 = prenorm_ref(x3, gamma3, beta3, w3, b3)
    assert out3.shape == (B3, S3, D3)
    assert jnp.allclose(out3, ref3, atol=5e-4, rtol=5e-4)

    print("KERNEL_OK")
</pallas_src>

<mosaic_0001>
module attributes {stable_mosaic.version = 11 : i64} {
  func.func @_prenorm_resident_kernel(%arg0: i32, %arg1: memref<16x128xf32, #tpu.memory_space<vmem>>, %arg2: memref<1x128xf32, #tpu.memory_space<vmem>>, %arg3: memref<1x128xf32, #tpu.memory_space<vmem>>, %arg4: memref<128x128xf32, #tpu.memory_space<vmem>>, %arg5: memref<1x128xf32, #tpu.memory_space<vmem>>, %arg6: memref<16x128xf32, #tpu.memory_space<vmem>>) attributes {dimension_semantics = [#tpu.dimension_semantics<parallel>], iteration_bounds = array<i64: 1>, scalar_prefetch = 0 : i64, scratch_operands = 0 : i64, tpu.core_type = #tpu.core_type<tc>, window_params = [{transform_indices = @transform_0, window_bounds = array<i64: 16, 128>}, {pipeline_mode = #tpu.pipeline_mode<synchronous>, transform_indices = @transform_1, window_bounds = array<i64: 1, 128>}, {pipeline_mode = #tpu.pipeline_mode<synchronous>, transform_indices = @transform_2, window_bounds = array<i64: 1, 128>}, {pipeline_mode = #tpu.pipeline_mode<synchronous>, transform_indices = @transform_3, window_bounds = array<i64: 128, 128>}, {pipeline_mode = #tpu.pipeline_mode<synchronous>, transform_indices = @transform_4, window_bounds = array<i64: 1, 128>}, {transform_indices = @transform_5, window_bounds = array<i64: 16, 128>}]} {
    %c0 = arith.constant 0 : index
    %c0_0 = arith.constant 0 : index
    %0 = vector.load %arg1[%c0, %c0_0] : memref<16x128xf32, #tpu.memory_space<vmem>>, vector<16x128xf32>
    %c0_1 = arith.constant 0 : index
    %c0_2 = arith.constant 0 : index
    %1 = vector.load %arg2[%c0_1, %c0_2] : memref<1x128xf32, #tpu.memory_space<vmem>>, vector<1x128xf32>
    %c0_3 = arith.constant 0 : index
    %c0_4 = arith.constant 0 : index
    %2 = vector.load %arg3[%c0_3, %c0_4] : memref<1x128xf32, #tpu.memory_space<vmem>>, vector<1x128xf32>
    %cst = arith.constant dense<0.000000e+00> : vector<16xf32>
    %3 = vector.multi_reduction <add>, %0, %cst [1] : vector<16x128xf32> to vector<16xf32>
    %4 = vector.shape_cast %3 : vector<16xf32> to vector<16x1xf32>
    %5 = arith.mulf %0, %0 : vector<16x128xf32>
    %cst_5 = arith.constant dense<0.000000e+00> : vector<16xf32>
    %6 = vector.multi_reduction <add>, %5, %cst_5 [1] : vector<16x128xf32> to vector<16xf32>
    %7 = vector.shape_cast %6 : vector<16xf32> to vector<16x1xf32>
    %cst_6 = arith.constant 3.125000e-02 : f32
    %8 = vector.broadcast %cst_6 : f32 to vector<16x1xf32>
    %9 = arith.mulf %4, %8 : vector<16x1xf32>
    %cst_7 = arith.constant 3.125000e-02 : f32
    %10 = vector.broadcast %cst_7 : f32 to vector<16x1xf32>
    %11 = arith.mulf %7, %10 : vector<16x1xf32>
    %12 = arith.mulf %9, %9 : vector<16x1xf32>
    %13 = arith.subf %11, %12 : vector<16x1xf32>
    %cst_8 = arith.constant 0.000000e+00 : f32
    %14 = vector.broadcast %cst_8 : f32 to vector<16x1xf32>
    %15 = arith.maximumf %13, %14 : vector<16x1xf32>
    %16 = vector.broadcast %9 : vector<16x1xf32> to vector<16x128xf32>
    %17 = arith.subf %0, %16 : vector<16x128xf32>
    %cst_9 = arith.constant 9.99999974E-6 : f32
    %18 = vector.broadcast %cst_9 : f32 to vector<16x1xf32>
    %19 = arith.addf %15, %18 : vector<16x1xf32>
    %20 = math.rsqrt %19 : vector<16x1xf32>
    %21 = vector.broadcast %20 : vector<16x1xf32> to vector<16x128xf32>
    %22 = arith.mulf %17, %21 : vector<16x128xf32>
    %23 = vector.broadcast %1 : vector<1x128xf32> to vector<16x128xf32>
    %24 = arith.mulf %22, %23 : vector<16x128xf32>
    %25 = vector.broadcast %2 : vector<1x128xf32> to vector<16x128xf32>
    %26 = arith.addf %24, %25 : vector<16x128xf32>
    %c0_10 = arith.constant 0 : index
    %c0_11 = arith.constant 0 : index
    %27 = vector.load %arg4[%c0_10, %c0_11] : memref<128x128xf32, #tpu.memory_space<vmem>>, vector<128x128xf32>
    %cst_12 = arith.constant dense<0.000000e+00> : vector<16x128xf32>
    %28 = tpu.matmul %26, %27, %cst_12 {dimension_numbers = #tpu.dot_dimension_numbers<[1], [0], [0], [1], [0, 0, 1, 1], [], []>} : vector<16x128xf32>, vector<128x128xf32>, vector<16x128xf32> -> vector<16x128xf32>
    %c0_13 = arith.constant 0 : index
    %c0_14 = arith.constant 0 : index
    %29 = vector.load %arg5[%c0_13, %c0_14] : memref<1x128xf32, #tpu.memory_space<vmem>>, vector<1x128xf32>
    %30 = vector.broadcast %29 : vector<1x128xf32> to vector<16x128xf32>
    %31 = arith.addf %28, %30 : vector<16x128xf32>
    %c0_15 = arith.constant 0 : index
    %c0_16 = arith.constant 0 : index
    %32 = vector.load %arg6[%c0_15, %c0_16] : memref<16x128xf32, #tpu.memory_space<vmem>>, vector<16x128xf32>
    tpu.vector_store %arg6[%c0_15, %c0_16], %31 {strides = array<i32>} : memref<16x128xf32, #tpu.memory_space<vmem>>, vector<16x128xf32>,
    return
  }
  func.func @transform_0(%arg0: i32) -> (i32, i32) {
    %c0_i32 = arith.constant 0 : i32
    %c0_i32_0 = arith.constant 0 : i32
    return %arg0, %c0_i32 : i32, i32
  }
  func.func @transform_1(%arg0: i32) -> (i32, i32) {
    %c0_i32 = arith.constant 0 : i32
    %c0_i32_0 = arith.constant 0 : i32
    %c0_i32_1 = arith.constant 0 : i32
    return %c0_i32, %c0_i32_0 : i32, i32
  }
  func.func @transform_2(%arg0: i32) -> (i32, i32) {
    %c0_i32 = arith.constant 0 : i32
    %c0_i32_0 = arith.constant 0 : i32
    %c0_i32_1 = arith.constant 0 : i32
    return %c0_i32, %c0_i32_0 : i32, i32
  }
  func.func @transform_3(%arg0: i32) -> (i32, i32) {
    %c0_i32 = arith.constant 0 : i32
    %c0_i32_0 = arith.constant 0 : i32
    %c0_i32_1 = arith.constant 0 : i32
    return %c0_i32, %c0_i32_0 : i32, i32
  }
  func.func @transform_4(%arg0: i32) -> (i32, i32) {
    %c0_i32 = arith.constant 0 : i32
    %c0_i32_0 = arith.constant 0 : i32
    %c0_i32_1 = arith.constant 0 : i32
    return %c0_i32, %c0_i32_0 : i32, i32
  }
  func.func @transform_5(%arg0: i32) -> (i32, i32) {
    %c0_i32 = arith.constant 0 : i32
    %c0_i32_0 = arith.constant 0 : i32
    return %arg0, %c0_i32 : i32, i32
  }
}

</mosaic_0001>

<llo_original>
// kernel: tpu_custom_call.1
$region0: #{tpu_custom_call.1}
  #allocation0 [shape = 'u32[]', space=smem, size = 0x4, offset = 0x4, fixed_abs, tag = 'smem constant byte address 0x4 - core index']
  #allocation1 [shape = 'u32[144,128]{1,0:T(1,128)}', space=vmem, size = 0x12000, scoped, tag = 'internal scratch']
  %s0 = inlined_call_operand.hbm [shape: f32[16,128], index: 0, kind: input, shape index: {}]
  %s1 = inlined_call_operand.vmem [shape: f32[1,128], index: 1, kind: input, shape index: {}]
  %s2 = inlined_call_operand.vmem [shape: f32[1,128], index: 2, kind: input, shape index: {}]
  %s3 = inlined_call_operand.hbm [shape: f32[128,128], index: 3, kind: input, shape index: {}]
  %s4 = inlined_call_operand.vmem [shape: f32[1,128], index: 4, kind: input, shape index: {}]
  %s5 = inlined_call_operand.hbm [shape: f32[16,128], index: 5, kind: output, shape index: {}]
  %s6 = sld [smem:[#allocation0]]
  $region38: #{tpu_custom_call.1} parent=0
    _
  %s8 = ssub.s32 1, %s6
  %s9 = scalar_select 0, %s8, %s6
  $region1: #{tpu_custom_call.1} parent=0
    #allocation2 [shape = 'u8[8192]{0}', space=vmem, size = 0x2000, scoped, tag = 'input window, operand 0, single buffered']
    #allocation3 [shape = 's32[1]{0}', space=sflag, size = 0x4, scoped, tag = 'scoped memory for tpu_custom_call.1']
    #allocation4 [shape = 's32[1]{0}', space=sflag, size = 0x4, scoped, tag = 'scoped memory for tpu_custom_call.1']
    #allocation5 [shape = 'u8[65536]{0}', space=vmem, size = 0x10000, scoped, tag = 'input window, operand 3, single buffered']
    #allocation6 [shape = 's32[1]{0}', space=sflag, size = 0x4, scoped, tag = 'scoped memory for tpu_custom_call.1']
    #allocation7 [shape = 'u8[8192]{0}', space=vmem, size = 0x2000, scoped, tag = 'output window, operand 0, single buffered']
    %10 = vsyncpa [#allocation3], 0
    %11 = vsyncpa [#allocation6], 0
    %12 = vsyncpa [#allocation4], 0
    // Predicated region
    $region2: #{tpu_custom_call.1} parent=1 // pred_check
      _
    $region3: #{tpu_custom_call.1} parent=1 // pred_check_branch
      %14 = sbr.rel (0) target = $region5
    $region4: #{tpu_custom_call.1} parent=1 // pred_region
      %s16 = ssub.s32 256, 256
      %17 = vsyncadd [#allocation3], %s16
      %s18 = sshll.u32 [#allocation2], 4
      %s19 = int_to_ptr.vmem [resolvable:$true] %s18
      %24 = dma.hbm_to_vmem [thread:$0]  %s0, 256, %s19, [#allocation3], 128, 128, 8
    $region5: #{tpu_custom_call.1} parent=1 // pred_fallthru
      _
    // Predicated region
    $region6: #{tpu_custom_call.1} parent=1 // pred_check
      _
    $region7: #{tpu_custom_call.1} parent=1 // pred_check_branch
      %26 = sbr.rel (0) target = $region9
    $region8: #{tpu_custom_call.1} parent=1 // pred_region
      _
    $region9: #{tpu_custom_call.1} parent=1 // pred_fallthru
      _
    // Predicated region
    $region10: #{tpu_custom_call.1} parent=1 // pred_check
      _
    $region11: #{tpu_custom_call.1} parent=1 // pred_check_branch
      %28 = sbr.rel (0) target = $region13
    $region12: #{tpu_custom_call.1} parent=1 // pred_region
      _
    $region13: #{tpu_custom_call.1} parent=1 // pred_fallthru
      _
    // Predicated region
    $region14: #{tpu_custom_call.1} parent=1 // pred_check
      _
    $region15: #{tpu_custom_call.1} parent=1 // pred_check_branch
      %30 = sbr.rel (0) target = $region17
    $region16: #{tpu_custom_call.1} parent=1 // pred_region
      %s32 = ssub.s32 2048, 2048
      %33 = vsyncadd [#allocation6], %s32
      %s34 = sshll.u32 [#allocation5], 4
      %s35 = int_to_ptr.vmem [resolvable:$true] %s34
      %40 = dma.hbm_to_vmem [thread:$0]  %s3, 2048, %s35, [#allocation6], 128, 128, 8
    $region17: #{tpu_custom_call.1} parent=1 // pred_fallthru
      _
    // Predicated region
    $region18: #{tpu_custom_call.1} parent=1 // pred_check
      _
    $region19: #{tpu_custom_call.1} parent=1 // pred_check_branch
      %42 = sbr.rel (0) target = $region21
    $region20: #{tpu_custom_call.1} parent=1 // pred_region
      _
    $region21: #{tpu_custom_call.1} parent=1 // pred_fallthru
      _
    // Predicated region
    $region22: #{tpu_custom_call.1} parent=1 // pred_check
      _
    $region23: #{tpu_custom_call.1} parent=1 // pred_check_branch
      %44 = sbr.rel (0) target = $region25
    $region24: #{tpu_custom_call.1} parent=1 // pred_region
      %45 = dma.done [#allocation3], 256
    $region25: #{tpu_custom_call.1} parent=1 // pred_fallthru
      _
    // Predicated region
    $region26: #{tpu_custom_call.1} parent=1 // pred_check
      _
    $region27: #{tpu_custom_call.1} parent=1 // pred_check_branch
      %47 = sbr.rel (0) target = $region29
    $region28: #{tpu_custom_call.1} parent=1 // pred_region
      %48 = dma.done [#allocation6], 2048
    $region29: #{tpu_custom_call.1} parent=1 // pred_fallthru
      _
    %v49 = vld [vmem:[#allocation2] sm:$0xff]
    %v50 = vld [vmem:[#allocation2 + $0x8] sm:$0xff]
    %v51 = vld [vmem:[%s1] sm:$0x1]
    %v52 = vld [vmem:[%s2] sm:$0x1]
    %53 = vadd.xlane.f32.xlu0 %v49
    %v54 = vpop.xlane.xlu0 %53
    %55 = vadd.xlane.f32.xlu0 %v50
    %v56 = vpop.xlane.xlu0 %55
    %v57 = vmul.f32 %v49, %v49
    %v58 = vmul.f32 %v50, %v50
    %59 = vadd.xlane.f32.xlu0 %v57
    %v60 = vpop.xlane.xlu0 %59
    %61 = vadd.xlane.f32.xlu0 %v58
    %v62 = vpop.xlane.xlu0 %61
    %v63 = vmul.f32 %v54, 0.03125
    %v64 = vmul.f32 %v56, 0.03125
    %v65 = vmul.f32 %v60, 0.03125
    %v66 = vmul.f32 %v62, 0.03125
    %v67 = vmul.f32 %v63, %v63
    %v68 = vmul.f32 %v64, %v64
    %v69 = vsub.f32 %v65, %v67
    %v70 = vsub.f32 %v66, %v68
    %v71 = vmax.f32 %v69, 0.0
    %v72 = vmax.f32 %v70, 0.0
    %v73 = vsub.f32 %v49, %v63
    %v74 = vsub.f32 %v50, %v64
    %v75 = vadd.f32 %v71, 1e-05
    %v76 = vadd.f32 %v72, 1e-05
    %v77 = vrsqrt.pop %v75
    %v78 = vrsqrt.pop %v76
    %v79 = vmul.f32 %v73, %v77
    %v80 = vmul.f32 %v74, %v78
    %v82 = vlaneseq
    %v83 = vshrl.u32 %v82, 7
    %v84 = vsub.s32 0, %v83
    %v85 = vrot.slane %v51, %v84
    %v87 = vmul.f32 %v79, %v85
    %v88 = vmul.f32 %v80, %v85
    %v90 = vlaneseq
    %v91 = vshrl.u32 %v90, 7
    %v92 = vsub.s32 0, %v91
    %v93 = vrot.slane %v52, %v92
    %v95 = vadd.f32 %v87, %v93
    %v96 = vadd.f32 %v88, %v93
    %v97 = vld [vmem:[#allocation5] sm:$0xff]
    %v98 = vld [vmem:[#allocation5 + $0x8] sm:$0xff]
    %v99 = vld [vmem:[#allocation5 + $0x10] sm:$0xff]
    %v100 = vld [vmem:[#allocation5 + $0x18] sm:$0xff]
    %v101 = vld [vmem:[#allocation5 + $0x20] sm:$0xff]
    %v102 = vld [vmem:[#allocation5 + $0x28] sm:$0xff]
    %v103 = vld [vmem:[#allocation5 + $0x30] sm:$0xff]
    %v104 = vld [vmem:[#allocation5 + $0x38] sm:$0xff]
    %v105 = vld [vmem:[#allocation5 + $0x40] sm:$0xff]
    %v106 = vld [vmem:[#allocation5 + $0x48] sm:$0xff]
    %v107 = vld [vmem:[#allocation5 + $0x50] sm:$0xff]
    %v108 = vld [vmem:[#allocation5 + $0x58] sm:$0xff]
    %v109 = vld [vmem:[#allocation5 + $0x60] sm:$0xff]
    %v110 = vld [vmem:[#allocation5 + $0x68] sm:$0xff]
    %v111 = vld [vmem:[#allocation5 + $0x70] sm:$0xff]
    %v112 = vld [vmem:[#allocation5 + $0x78] sm:$0xff]
    %v113 = vld [vmem:[%s4] sm:$0x1]
    %v115 = vlaneseq
    %v116 = vshrl.u32 %v115, 7
    %v117 = vsub.s32 0, %v116
    %v118 = vrot.slane %v113, %v117
    %120 = vmatprep.subr.mxu0 0.0
    %121 = vmatpush1.msra.mxu0 %v97
    %122 = vmatprep.subr.mxu0 0.0
    %123 = vmatpush1.msra.mxu0 %v98
    %124 = vmatprep.subr.mxu0 0.0
    %125 = vmatpush1.msra.mxu0 %v99
    %126 = vmatprep.subr.mxu0 0.0
    %127 = vmatpush1.msra.mxu0 %v100
    %128 = vmatprep.subr.mxu0 0.0
    %129 = vmatpush1.msra.mxu0 %v101
    %130 = vmatprep.subr.mxu0 0.0
    %131 = vmatpush1.msra.mxu0 %v102
    %132 = vmatprep.subr.mxu0 0.0
    %133 = vmatpush1.msra.mxu0 %v103
    %134 = vmatprep.subr.mxu0 0.0
    %135 = vmatpush1.msra.mxu0 %v104
    %136 = vmatprep.subr.mxu0 0.0
    %137 = vmatpush1.msra.mxu0 %v105
    %138 = vmatprep.subr.mxu0 0.0
    %139 = vmatpush1.msra.mxu0 %v106
    %140 = vmatprep.subr.mxu0 0.0
    %141 = vmatpush1.msra.mxu0 %v107
    %142 = vmatprep.subr.mxu0 0.0
    %143 = vmatpush1.msra.mxu0 %v108
    %144 = vmatprep.subr.mxu0 0.0
    %145 = vmatpush1.msra.mxu0 %v109
    %146 = vmatprep.subr.mxu0 0.0
    %147 = vmatpush1.msra.mxu0 %v110
    %148 = vmatprep.subr.mxu0 0.0
    %149 = vmatpush1.msra.mxu0 %v111
    %150 = vmatprep.subr.mxu0 0.0
    %151 = vmatpush1.msra.mxu0 %v112
    %152 = vmatprep.subr.mxu0 0.0
    %153 = vmatpush1.msra.mxu0 0.0
    %154 = vmatprep.subr.mxu0 0.0
    %155 = vmatpush1.msra.mxu0 0.0
    %156 = vmatprep.subr.mxu0 0.0
    %157 = vmatpush1.msra.mxu0 0.0
    %158 = vmatprep.subr.mxu0 0.0
    %159 = vmatpush1.msra.mxu0 0.0
    %160 = vmatprep.subr.mxu0 0.0
    %161 = vmatpush1.msra.mxu0 0.0
    %162 = vmatprep.subr.mxu0 0.0
    %163 = vmatpush1.msra.mxu0 0.0
    %164 = vmatprep.subr.mxu0 0.0
    %165 = vmatpush1.msra.mxu0 0.0
    %166 = vmatprep.subr.mxu0 0.0
    %167 = vmatpush1.msra.mxu0 0.0
    %168 = vmatprep.subr.mxu0 0.0
    %169 = vmatpush1.msra.mxu0 0.0
    %170 = vmatprep.subr.mxu0 0.0
    %171 = vmatpush1.msra.mxu0 0.0
    %172 = vmatprep.subr.mxu0 0.0
    %173 = vmatpush1.msra.mxu0 0.0
    %174 = vmatprep.subr.mxu0 0.0
    %175 = vmatpush1.msra.mxu0 0.0
    %176 = vmatprep.subr.mxu0 0.0
    %177 = vmatpush1.msra.mxu0 0.0
    %178 = vmatprep.subr.mxu0 0.0
    %179 = vmatpush1.msra.mxu0 0.0
    %180 = vmatprep.subr.mxu0 0.0
    %181 = vmatpush1.msra.mxu0 0.0
    %182 = vmatprep.subr.mxu0 0.0
    %183 = vmatpush1.msra.mxu0 0.0
    %184 = vmatprep.mubr.f32.mxu0 0.0
    %185 = vmatmul.mubr.f32.gmra.mrb[0].mxu0 %v95
    %v186 = vpop.f32.mrb[0].mxu0
    %v187 = vadd.f32 %v118, %v186
    %v188 = vpop.f32.mrb[0].mxu0
    %189 = vmatprep.mubr.f32.mxu0 0.0
    %190 = vmatmul.mubr.f32.gmra.mrb[0].mxu0 %v96
    %v191 = vpop.f32.mrb[0].mxu0
    %v192 = vadd.f32 %v118, %v191
    %v193 = vpop.f32.mrb[0].mxu0
    %194 = vdwg.mxu0
    %195 = vst [vmem:[#allocation7] sm:$0xff] %v187
    %196 = vst [vmem:[#allocation7 + $0x8] sm:$0xff] %v192
    // Predicated region
    $region30: #{tpu_custom_call.1} parent=1 // pred_check
      _
    $region31: #{tpu_custom_call.1} parent=1 // pred_check_branch
      %198 = sbr.rel (0) target = $region33
    $region32: #{tpu_custom_call.1} parent=1 // pred_region
      %s200 = ssub.s32 256, 256
      %201 = vsyncadd [#allocation4], %s200
      %s202 = sshll.u32 [#allocation7], 4
      %s203 = int_to_ptr.vmem [resolvable:$true] %s202
      %208 = dma.vmem_to_hbm [thread:$0]  %s203, 256, %s5, [#allocation4], 128, 128, 8
    $region33: #{tpu_custom_call.1} parent=1 // pred_fallthru
      _
    // Predicated region
    $region34: #{tpu_custom_call.1} parent=1 // pred_check
      _
    $region35: #{tpu_custom_call.1} parent=1 // pred_check_branch
      %210 = sbr.rel (0) target = $region37
    $region36: #{tpu_custom_call.1} parent=1 // pred_region
      %211 = dma.done [#allocation4], 256
    $region37: #{tpu_custom_call.1} parent=1 // pred_fallthru
      _
    %212 = vsyncpa [#allocation3], 1
    %213 = vsyncpa [#allocation6], 1
    %214 = vsyncpa [#allocation4], 1

</llo_original>
